<compile_context>
chip_gen: v7x
topology: tpu7x:2x2x1
jax: 0.10.0
libtpu: 0.0.40
codegen_flags: <defaults>
</compile_context>

<pallas_src>
import jax
import jax.numpy as jnp
from jax.experimental import pallas as pl
from jax.experimental.pallas import tpu as pltpu


def _round_up(x, m):
    return (x + m - 1) // m * m


# ----------------------------------------------------------------------------
# Row-tiled matmul(+bias) kernel:  out = patches @ W + b
#   grid = (row_tiles, k_tiles); rows "parallel", K "arbitrary";
#   accumulate in f32 VMEM scratch, store once on the last K step.
# ----------------------------------------------------------------------------
def _matmul_bias_kernel(p_ref, w_ref, b_ref, o_ref, acc_ref):
    k = pl.program_id(1)

    @pl.when(k == 0)
    def _():
        acc_ref[...] = jnp.broadcast_to(b_ref[...], acc_ref.shape)

    acc_ref[...] += jnp.dot(p_ref[...], w_ref[...],
                            preferred_element_type=jnp.float32)

    @pl.when(k == pl.num_programs(1) - 1)
    def _():
        o_ref[...] = acc_ref[...]


def _tiled_matmul_bias(patches, wmat, bias, *, tm=512, tk_max=2048,
                       compute_dtype=jnp.float32):
    """patches: (nrows, K); wmat: (K, Cout); bias: (Cout,).  Returns (nrows, Cout) f32."""
    nrows, K = patches.shape
    Cout = wmat.shape[1]

    tm_eff = min(tm, _round_up(nrows, 8))
    nrows_pad = _round_up(nrows, tm_eff)
    if K <= tk_max:
        tk, K_pad = K, K
    else:
        tk = 512
        K_pad = _round_up(K, tk)

    if nrows_pad != nrows or K_pad != K:
        patches = jnp.pad(patches, ((0, nrows_pad - nrows), (0, K_pad - K)))
    if K_pad != K:
        wmat = jnp.pad(wmat, ((0, K_pad - K), (0, 0)))

    patches = patches.astype(compute_dtype)
    wmat = wmat.astype(compute_dtype)
    bias2 = bias.reshape(1, Cout).astype(jnp.float32)

    grid = (nrows_pad // tm_eff, K_pad // tk)
    isz = jnp.dtype(compute_dtype).itemsize
    vmem_bytes = int(2 * (2 * tm_eff * tk * isz + 2 * tk * Cout * isz
                          + 2 * tm_eff * Cout * 4)
                     + tm_eff * Cout * 4 + 4 * Cout)
    vmem_bytes = min(max(vmem_bytes, 1 << 20), 64 * 1024 * 1024)
    cost = pl.CostEstimate(
        flops=2 * nrows_pad * K_pad * Cout,
        transcendentals=0,
        bytes_accessed=int(patches.size * isz + wmat.size * isz
                           + nrows_pad * Cout * 4))

    out = pl.pallas_call(
        _matmul_bias_kernel,
        out_shape=jax.ShapeDtypeStruct((nrows_pad, Cout), jnp.float32),
        grid=grid,
        in_specs=[
            pl.BlockSpec((tm_eff, tk), lambda i, k: (i, k)),
            pl.BlockSpec((tk, Cout), lambda i, k: (k, 0)),
            pl.BlockSpec((1, Cout), lambda i, k: (0, 0)),
        ],
        out_specs=pl.BlockSpec((tm_eff, Cout), lambda i, k: (i, 0)),
        scratch_shapes=[pltpu.VMEM((tm_eff, Cout), jnp.float32)],
        compiler_params=pltpu.CompilerParams(
            dimension_semantics=("parallel", "arbitrary"),
            vmem_limit_bytes=vmem_bytes),
        cost_estimate=cost,
    )(patches, wmat, bias2)
    return out[:nrows]


# ----------------------------------------------------------------------------
# Conv2d (stride 1) as a single long-K matmul (taps folded into K)
# ----------------------------------------------------------------------------
def conv2d(x, w, b, padding=0, *, compute_dtype=jnp.float32):
    """x: (B,H,W,Cin) NHWC; w: (kH,kW,Cin,Cout) HWIO; b: (Cout,)."""
    if padding:
        x = jnp.pad(x, ((0, 0), (padding, padding), (padding, padding), (0, 0)))
    B, Hp, Wp, Cin = x.shape
    kH, kW, _, Cout = w.shape
    Ho, Wo = Hp - kH + 1, Wp - kW + 1
    nrows = B * Ho * Wo
    K = kH * kW * Cin

    # Tap extraction folded into the contraction dim (built once, streamed
    # through the row-tiled pipeline).
    # TODO(synk): read tap windows from the padded input inside the kernel
    # (shifted windows) to remove the kH*kW HBM duplication entirely.
    if kH == 1 and kW == 1:
        patches = x.reshape(nrows, Cin)
    else:
        taps = [x[:, kh:kh + Ho, kw:kw + Wo, :]
                for kh in range(kH) for kw in range(kW)]
        patches = jnp.concatenate(taps, axis=-1).reshape(nrows, K)
    wmat = w.reshape(K, Cout)

    out = _tiled_matmul_bias(patches, wmat, b, compute_dtype=compute_dtype)
    return out.reshape(B, Ho, Wo, Cout)


# ----------------------------------------------------------------------------
# ConvTranspose2d(k=4, stride=2, padding=1) via sub-pixel phase decomposition:
# four 2x2 valid convs on the un-dilated input, interleaved into the output.
# ----------------------------------------------------------------------------
def conv_transpose2d(x, w_t, b, stride=2, padding=1, *, compute_dtype=jnp.float32):
    """x: (B,H,W,Cin) NHWC; w_t: PyTorch layout (Cin, Cout, kH, kW)."""
    Cin, Cout, kH, kW = w_t.shape
    assert (stride, padding, kH, kW) == (2, 1, 4, 4), "specialized to k=4,s=2,p=1"
    B, H, W, _ = x.shape
    xp = jnp.pad(x, ((0, 0), (1, 1), (1, 1), (0, 0)))

    # phase 0 rows: out[2i]   = x[i-1]*W[kh=3] + x[i]*W[kh=1]
    # phase 1 rows: out[2i+1] = x[i]  *W[kh=2] + x[i+1]*W[kh=0]     (same for cols)
    phase_rows = {0: (slice(0, H + 1), (3, 1)), 1: (slice(1, H + 2), (2, 0))}
    phase_cols = {0: (slice(0, W + 1), (3, 1)), 1: (slice(1, W + 2), (2, 0))}

    phases = []
    for py in (0, 1):
        rsl, khs = phase_rows[py]
        for px in (0, 1):
            csl, kws = phase_cols[px]
            sub = w_t[:, :, jnp.array(khs), :][:, :, :, jnp.array(kws)]  # (Cin,Cout,2,2)
            sub = jnp.transpose(sub, (2, 3, 0, 1))                       # (2,2,Cin,Cout)
            phases.append(conv2d(xp[:, rsl, csl, :], sub, b, padding=0,
                                 compute_dtype=compute_dtype))           # (B,H,W,Cout)

    ph = jnp.stack(phases, axis=0).reshape(2, 2, B, H, W, Cout)
    out = jnp.transpose(ph, (2, 3, 0, 4, 1, 5)).reshape(B, 2 * H, 2 * W, Cout)
    return out


# ----------------------------------------------------------------------------
# Fused GroupNorm + SiLU (+ time bias | + residual), gridded over batch
# ----------------------------------------------------------------------------
def _group_avg_matrix(C, G):
    Cg = C // G
    gid = jnp.arange(C) // Cg
    return (gid[:, None] == gid[None, :]).astype(jnp.float32) / Cg


def _gn_silu_core(x, gamma, beta, gmat, eps=1e-5):
    # x: (HW, C) f32; gamma/beta: (1, C); gmat: (C, C) group-averaging matrix.
    mean_c = jnp.mean(x, axis=0, keepdims=True)                        # (1, C)
    gmean = jnp.dot(mean_c, gmat, preferred_element_type=jnp.float32)  # (1, C)
    xc = x - gmean
    var_c = jnp.mean(xc * xc, axis=0, keepdims=True)                   # centered
    gvar = jnp.dot(var_c, gmat, preferred_element_type=jnp.float32)
    inv = jax.lax.rsqrt(gvar + eps)
    y = xc * inv * gamma + beta
    return y * jax.nn.sigmoid(y)                                       # SiLU


def _gn_silu_time_kernel(x_ref, g_ref, be_ref, gm_ref, t_ref, wt_ref, bt_ref, o_ref):
    y = _gn_silu_core(x_ref[0], g_ref[...], be_ref[...], gm_ref[...])
    temb = jnp.dot(t_ref[0], wt_ref[...],
                   preferred_element_type=jnp.float32) + bt_ref[...]
    o_ref[0] = y + temb


def _gn_silu_add_kernel(x_ref, g_ref, be_ref, gm_ref, r_ref, o_ref):
    y = _gn_silu_core(x_ref[0], g_ref[...], be_ref[...], gm_ref[...])
    o_ref[0] = y + r_ref[0]


def _gn_vmem_limit(hw, c):
    base = hw * c * 4
    return min(max(int(8 * base + c * c * 4 + (1 << 18)), 1 << 20), 64 * 1024 * 1024)


def gn_silu_time(x, gamma, beta, t, wt, bt, num_groups=8):
    """GroupNorm(num_groups) -> SiLU -> + Linear(t) broadcast over H,W."""
    # TODO(synk): if a single (HW, C) slab ever exceeds VMEM, switch to a
    # two-pass HW-tiled stats accumulation.
    B, H, W, C = x.shape
    HW = H * W
    Tc = t.shape[-1]
    gmat = _group_avg_matrix(C, num_groups)
    out = pl.pallas_call(
        _gn_silu_time_kernel,
        out_shape=jax.ShapeDtypeStruct((B, HW, C), jnp.float32),
        grid=(B,),
        in_specs=[
            pl.BlockSpec((1, HW, C), lambda b: (b, 0, 0)),
            pl.BlockSpec((1, C), lambda b: (0, 0)),
            pl.BlockSpec((1, C), lambda b: (0, 0)),
            pl.BlockSpec((C, C), lambda b: (0, 0)),
            pl.BlockSpec((1, 1, Tc), lambda b: (b, 0, 0)),
            pl.BlockSpec((Tc, C), lambda b: (0, 0)),
            pl.BlockSpec((1, C), lambda b: (0, 0)),
        ],
        out_specs=pl.BlockSpec((1, HW, C), lambda b: (b, 0, 0)),
        compiler_params=pltpu.CompilerParams(
            dimension_semantics=("parallel",),
            vmem_limit_bytes=_gn_vmem_limit(HW, C)),
    )(x.reshape(B, HW, C), gamma.reshape(1, -1), beta.reshape(1, -1), gmat,
      t.reshape(B, 1, Tc), wt, bt.reshape(1, -1))
    return out.reshape(B, H, W, C)


def gn_silu_add(x, gamma, beta, residual, num_groups=8):
    """GroupNorm(num_groups) -> SiLU -> + residual."""
    B, H, W, C = x.shape
    HW = H * W
    gmat = _group_avg_matrix(C, num_groups)
    out = pl.pallas_call(
        _gn_silu_add_kernel,
        out_shape=jax.ShapeDtypeStruct((B, HW, C), jnp.float32),
        grid=(B,),
        in_specs=[
            pl.BlockSpec((1, HW, C), lambda b: (b, 0, 0)),
            pl.BlockSpec((1, C), lambda b: (0, 0)),
            pl.BlockSpec((1, C), lambda b: (0, 0)),
            pl.BlockSpec((C, C), lambda b: (0, 0)),
            pl.BlockSpec((1, HW, C), lambda b: (b, 0, 0)),
        ],
        out_specs=pl.BlockSpec((1, HW, C), lambda b: (b, 0, 0)),
        compiler_params=pltpu.CompilerParams(
            dimension_semantics=("parallel",),
            vmem_limit_bytes=_gn_vmem_limit(HW, C)),
    )(x.reshape(B, HW, C), gamma.reshape(1, -1), beta.reshape(1, -1), gmat,
      residual.reshape(B, HW, C))
    return out.reshape(B, H, W, C)


# ----------------------------------------------------------------------------
# UpBlock forward (Pallas-kernel path)
# ----------------------------------------------------------------------------
def upblock_forward(params, x_nchw, skip_nchw, t, *, compute_dtype=jnp.float32):
    # NCHW in/out (PyTorch convention); NHWC inside the kernels.
    x = jnp.transpose(x_nchw, (0, 2, 3, 1)).astype(jnp.float32)
    skip = jnp.transpose(skip_nchw, (0, 2, 3, 1)).astype(jnp.float32)

    # self.up(x): ConvTranspose2d(in, out, 4, stride=2, padding=1)
    h = conv_transpose2d(x, params['up_w'], params['up_b'],
                         stride=2, padding=1, compute_dtype=compute_dtype)

    if h.shape[1:3] != skip.shape[1:3]:
        # TODO(synk): F.interpolate(bilinear, align_corners=False) fallback kept in plain JAX.
        skip = jax.image.resize(
            skip, (skip.shape[0], h.shape[1], h.shape[2], skip.shape[3]),
            method='bilinear')

    # self.skip_conv(skip): 1x1 conv
    sk = conv2d(skip, params['skip_w'], params['skip_b'], padding=0,
                compute_dtype=compute_dtype)

    # torch.cat([x, skip], dim=1)  -> channel axis in NHWC is -1
    # TODO(synk): fuse the concat into the c1 / shortcut consumers (split-K
    # accumulation over the two channel halves) to avoid materializing `cat`.
    cat = jnp.concatenate([h, sk], axis=-1)

    # ResidualBlock(2*out, out, time)
    h1 = conv2d(cat, params['c1_w'], params['c1_b'], padding=1,
                compute_dtype=compute_dtype)
    h1 = gn_silu_time(h1, params['n1_g'], params['n1_b'], t,
                      params['t_w'], params['t_b'])
    h2 = conv2d(h1, params['c2_w'], params['c2_b'], padding=1,
                compute_dtype=compute_dtype)
    sc = conv2d(cat, params['sc_w'], params['sc_b'], padding=0,
                compute_dtype=compute_dtype)                        # shortcut 1x1
    out = gn_silu_add(h2, params['n2_g'], params['n2_b'], sc)

    return jnp.transpose(out, (0, 3, 1, 2))


# ----------------------------------------------------------------------------
# Pure-JAX reference (correctness check)
# ----------------------------------------------------------------------------
def _ref_gn(x, gamma, beta, G=8, eps=1e-5):
    B, H, W, C = x.shape
    xg = x.reshape(B, H, W, G, C // G)
    mean = xg.mean(axis=(1, 2, 4), keepdims=True)
    var = ((xg - mean) ** 2).mean(axis=(1, 2, 4), keepdims=True)
    xn = ((xg - mean) * jax.lax.rsqrt(var + eps)).reshape(B, H, W, C)
    return xn * gamma.reshape(1, 1, 1, -1) + beta.reshape(1, 1, 1, -1)


def ref_upblock(params, x_nchw, skip_nchw, t):
    dn = ('NHWC', 'HWIO', 'NHWC')
    x = jnp.transpose(x_nchw, (0, 2, 3, 1))
    skip = jnp.transpose(skip_nchw, (0, 2, 3, 1))
    up_w = jnp.transpose(params['up_w'][:, :, ::-1, ::-1], (2, 3, 0, 1))
    h = jax.lax.conv_general_dilated(x, up_w, (1, 1), [(2, 2), (2, 2)],
                                     lhs_dilation=(2, 2), dimension_numbers=dn)
    h = h + params['up_b'].reshape(1, 1, 1, -1)
    sk = jax.lax.conv_general_dilated(skip, params['skip_w'], (1, 1), [(0, 0), (0, 0)],
                                      dimension_numbers=dn) + params['skip_b'].reshape(1, 1, 1, -1)
    cat = jnp.concatenate([h, sk], axis=-1)
    h1 = jax.lax.conv_general_dilated(cat, params['c1_w'], (1, 1), [(1, 1), (1, 1)],
                                      dimension_numbers=dn) + params['c1_b'].reshape(1, 1, 1, -1)
    h1 = jax.nn.silu(_ref_gn(h1, params['n1_g'], params['n1_b']))
    temb = t @ params['t_w'] + params['t_b']
    h1 = h1 + temb[:, None, None, :]
    h2 = jax.lax.conv_general_dilated(h1, params['c2_w'], (1, 1), [(1, 1), (1, 1)],
                                      dimension_numbers=dn) + params['c2_b'].reshape(1, 1, 1, -1)
    h2 = jax.nn.silu(_ref_gn(h2, params['n2_g'], params['n2_b']))
    sc = jax.lax.conv_general_dilated(cat, params['sc_w'], (1, 1), [(0, 0), (0, 0)],
                                      dimension_numbers=dn) + params['sc_b'].reshape(1, 1, 1, -1)
    return jnp.transpose(h2 + sc, (0, 3, 1, 2))


# ----------------------------------------------------------------------------
if __name__ == "__main__":
    B, Cin, Cout, Tc, H, W = 2, 8, 16, 16, 8, 8
    keys = jax.random.split(jax.random.PRNGKey(0), 20)
    n = jax.random.normal
    params = {
        # ConvTranspose2d weight kept in PyTorch (Cin, Cout, kH, kW) layout
        'up_w':   0.1 * n(keys[0], (Cin, Cout, 4, 4), jnp.float32),
        'up_b':   0.1 * n(keys[1], (Cout,), jnp.float32),
        # Conv2d weights stored as (kH, kW, Cin, Cout)  (HWIO)
        'skip_w': 0.1 * n(keys[2], (1, 1, Cin, Cout), jnp.float32),
        'skip_b': 0.1 * n(keys[3], (Cout,), jnp.float32),
        'c1_w':   0.1 * n(keys[4], (3, 3, 2 * Cout, Cout), jnp.float32),
        'c1_b':   0.1 * n(keys[5], (Cout,), jnp.float32),
        'c2_w':   0.1 * n(keys[6], (3, 3, Cout, Cout), jnp.float32),
        'c2_b':   0.1 * n(keys[7], (Cout,), jnp.float32),
        # Linear(time_channels, out_channels) stored as (Tc, Cout)
        't_w':    0.1 * n(keys[8], (Tc, Cout), jnp.float32),
        't_b':    0.1 * n(keys[9], (Cout,), jnp.float32),
        'n1_g':   1.0 + 0.1 * n(keys[10], (Cout,), jnp.float32),
        'n1_b':   0.1 * n(keys[11], (Cout,), jnp.float32),
        'n2_g':   1.0 + 0.1 * n(keys[12], (Cout,), jnp.float32),
        'n2_b':   0.1 * n(keys[13], (Cout,), jnp.float32),
        'sc_w':   0.1 * n(keys[14], (1, 1, 2 * Cout, Cout), jnp.float32),
        'sc_b':   0.1 * n(keys[15], (Cout,), jnp.float32),
    }
    x = n(keys[16], (B, Cin, H, W), jnp.float32)              # low-res feature map
    skip = n(keys[17], (B, Cin, 2 * H, 2 * W), jnp.float32)   # encoder skip (already 2x)
    t = n(keys[18], (B, Tc), jnp.float32)                     # time embedding

    # f32 MXU path: tight check vs. the pure-JAX reference.
    out = upblock_forward(params, x, skip, t)
    out = jax.block_until_ready(out)
    assert out.shape == (B, Cout, 2 * H, 2 * W), out.shape

    ref = ref_upblock(params, x, skip, t)
    if not jnp.allclose(out, ref, rtol=2e-3, atol=2e-3):
        raise AssertionError(
            "mismatch vs reference, max abs err = %e"
            % float(jnp.max(jnp.abs(out - ref))))

    # bf16 MXU path (f32 accumulation): loose sanity bound for reduced precision.
    out_bf16 = jax.block_until_ready(
        upblock_forward(params, x, skip, t, compute_dtype=jnp.bfloat16))
    err_bf16 = float(jnp.max(jnp.abs(out_bf16 - ref)))
    assert bool(jnp.isfinite(out_bf16).all()), "non-finite bf16 output"
    assert err_bf16 < 0.3, "bf16 path max abs err too large: %e" % err_bf16

    print("KERNEL_OK")
</pallas_src>

<mosaic_0001>
module attributes {stable_mosaic.version = 11 : i64} {
  func.func @_matmul_bias_kernel(%arg0: i32, %arg1: i32, %arg2: memref<128x32xf32, #tpu.memory_space<vmem>>, %arg3: memref<32x16xf32, #tpu.memory_space<vmem>>, %arg4: memref<1x16xf32, #tpu.memory_space<vmem>>, %arg5: memref<128x16xf32, #tpu.memory_space<vmem>>, %arg6: memref<128x16xf32, #tpu.memory_space<vmem>>) attributes {dimension_semantics = [#tpu.dimension_semantics<parallel>, #tpu.dimension_semantics<arbitrary>], iteration_bounds = array<i64: 1, 1>, scalar_prefetch = 0 : i64, scratch_operands = 1 : i64, tpu.core_type = #tpu.core_type<tc>, window_params = [{transform_indices = @transform_0, window_bounds = array<i64: 128, 32>}, {transform_indices = @transform_1, window_bounds = array<i64: 32, 16>}, {pipeline_mode = #tpu.pipeline_mode<synchronous>, transform_indices = @transform_2, window_bounds = array<i64: 1, 16>}, {transform_indices = @transform_3, window_bounds = array<i64: 128, 16>}]} {
    %c0_i32 = arith.constant 0 : i32
    %0 = arith.cmpi eq, %arg1, %c0_i32 : i32
    %1 = arith.extui %0 : i1 to i32
    %c0_i32_0 = arith.constant 0 : i32
    %2 = arith.cmpi ne, %1, %c0_i32_0 : i32
    scf.if %2 {
      %c0_10 = arith.constant 0 : index
      %c0_11 = arith.constant 0 : index
      %12 = vector.load %arg4[%c0_10, %c0_11] : memref<1x16xf32, #tpu.memory_space<vmem>>, vector<1x16xf32>
      %13 = vector.shape_cast %12 : vector<1x16xf32> to vector<1x16xf32>
      %14 = vector.broadcast %13 : vector<1x16xf32> to vector<128x16xf32>
      %c0_12 = arith.constant 0 : index
      %c0_13 = arith.constant 0 : index
      %15 = vector.load %arg6[%c0_12, %c0_13] : memref<128x16xf32, #tpu.memory_space<vmem>>, vector<128x16xf32>
      tpu.vector_store %arg6[%c0_12, %c0_13], %14 {strides = array<i32>} : memref<128x16xf32, #tpu.memory_space<vmem>>, vector<128x16xf32>,
    } else {
    }
    %c0 = arith.constant 0 : index
    %c0_1 = arith.constant 0 : index
    %3 = vector.load %arg6[%c0, %c0_1] : memref<128x16xf32, #tpu.memory_space<vmem>>, vector<128x16xf32>
    %c0_2 = arith.constant 0 : index
    %c0_3 = arith.constant 0 : index
    %4 = vector.load %arg2[%c0_2, %c0_3] : memref<128x32xf32, #tpu.memory_space<vmem>>, vector<128x32xf32>
    %c0_4 = arith.constant 0 : index
    %c0_5 = arith.constant 0 : index
    %5 = vector.load %arg3[%c0_4, %c0_5] : memref<32x16xf32, #tpu.memory_space<vmem>>, vector<32x16xf32>
    %cst = arith.constant dense<0.000000e+00> : vector<128x16xf32>
    %6 = tpu.matmul %4, %5, %cst {dimension_numbers = #tpu.dot_dimension_numbers<[1], [0], [0], [1], [0, 0, 1, 1], [], []>} : vector<128x32xf32>, vector<32x16xf32>, vector<128x16xf32> -> vector<128x16xf32>
    %7 = arith.addf %3, %6 : vector<128x16xf32>
    %c0_6 = arith.constant 0 : index
    %c0_7 = arith.constant 0 : index
    %8 = vector.load %arg6[%c0_6, %c0_7] : memref<128x16xf32, #tpu.memory_space<vmem>>, vector<128x16xf32>
    tpu.vector_store %arg6[%c0_6, %c0_7], %7 {strides = array<i32>} : memref<128x16xf32, #tpu.memory_space<vmem>>, vector<128x16xf32>,
    %c0_i32_8 = arith.constant 0 : i32
    %9 = arith.cmpi eq, %arg1, %c0_i32_8 : i32
    %10 = arith.extui %9 : i1 to i32
    %c0_i32_9 = arith.constant 0 : i32
    %11 = arith.cmpi ne, %10, %c0_i32_9 : i32
    scf.if %11 {
      %c0_10 = arith.constant 0 : index
      %c0_11 = arith.constant 0 : index
      %12 = vector.load %arg6[%c0_10, %c0_11] : memref<128x16xf32, #tpu.memory_space<vmem>>, vector<128x16xf32>
      %c0_12 = arith.constant 0 : index
      %c0_13 = arith.constant 0 : index
      %13 = vector.load %arg5[%c0_12, %c0_13] : memref<128x16xf32, #tpu.memory_space<vmem>>, vector<128x16xf32>
      tpu.vector_store %arg5[%c0_12, %c0_13], %12 {strides = array<i32>} : memref<128x16xf32, #tpu.memory_space<vmem>>, vector<128x16xf32>,
    } else {
    }
    return
  }
  func.func @transform_0(%arg0: i32, %arg1: i32) -> (i32, i32) {
    %c0_i32 = arith.constant 0 : i32
    return %arg0, %arg1 : i32, i32
  }
  func.func @transform_1(%arg0: i32, %arg1: i32) -> (i32, i32) {
    %c0_i32 = arith.constant 0 : i32
    %c0_i32_0 = arith.constant 0 : i32
    return %arg1, %c0_i32 : i32, i32
  }
  func.func @transform_2(%arg0: i32, %arg1: i32) -> (i32, i32) {
    %c0_i32 = arith.constant 0 : i32
    %c0_i32_0 = arith.constant 0 : i32
    %c0_i32_1 = arith.constant 0 : i32
    return %c0_i32, %c0_i32_0 : i32, i32
  }
  func.func @transform_3(%arg0: i32, %arg1: i32) -> (i32, i32) {
    %c0_i32 = arith.constant 0 : i32
    %c0_i32_0 = arith.constant 0 : i32
    return %arg0, %c0_i32 : i32, i32
  }
}

</mosaic_0001>

<llo_original>
// kernel: tpu_custom_call.1
$region0: #{tpu_custom_call.1}
  #allocation0 [shape = 'u32[]', space=smem, size = 0x4, offset = 0x4, fixed_abs, tag = 'smem constant byte address 0x4 - core index']
  #allocation1 [shape = 'u32[144,128]{1,0:T(1,128)}', space=vmem, size = 0x12000, scoped, tag = 'internal scratch']
  #allocation2 [shape = 'f32[128,16]{1,0:T(8,128)}', space=vmem, size = 0x10000, scoped, tag = 'scratch operand']
  %s0 = inlined_call_operand.vmem [shape: f32[128,32], index: 0, kind: input, shape index: {}]
  %s1 = inlined_call_operand.vmem [shape: f32[32,16], index: 1, kind: input, shape index: {}]
  %s2 = inlined_call_operand.vmem [shape: f32[1,16], index: 2, kind: input, shape index: {}]
  %s3 = inlined_call_operand.vmem [shape: f32[128,16], index: 3, kind: output, shape index: {}]
  %s4 = sld [smem:[#allocation0]]
  $region30: #{tpu_custom_call.1} parent=0
    _
  %s6 = ssub.s32 1, %s4
  %s7 = scalar_select 0, %s6, %s4
  // Predicated region
  $region2: #{tpu_custom_call.1} parent=0 // pred_check
    _
  $region3: #{tpu_custom_call.1} parent=0 // pred_check_branch
    %9 = sbr.rel (0) target = $region5
  $region4: #{tpu_custom_call.1} parent=0 // pred_region
    _
  $region5: #{tpu_custom_call.1} parent=0 // pred_fallthru
    _
  // Predicated region
  $region6: #{tpu_custom_call.1} parent=0 // pred_check
    _
  $region7: #{tpu_custom_call.1} parent=0 // pred_check_branch
    %11 = sbr.rel (0) target = $region9
  $region8: #{tpu_custom_call.1} parent=0 // pred_region
    _
  $region9: #{tpu_custom_call.1} parent=0 // pred_fallthru
    _
  // Predicated region
  $region10: #{tpu_custom_call.1} parent=0 // pred_check
    _
  $region11: #{tpu_custom_call.1} parent=0 // pred_check_branch
    %13 = sbr.rel (0) target = $region13
  $region12: #{tpu_custom_call.1} parent=0 // pred_region
    _
  $region13: #{tpu_custom_call.1} parent=0 // pred_fallthru
    _
  %p14 = scmp.eq.s32.totalorder 0, 0
  // Predicated region
  $region14: #{tpu_custom_call.1} parent=0 // pred_check
    %p15 = pneg %p14
  $region15: #{tpu_custom_call.1} parent=0 // pred_check_branch
    %17 = sbr.rel (%p15) target = $region17
  $region16: #{tpu_custom_call.1} parent=0 // pred_region
    %v18 = vld [vmem:[%s2] sm:$0x1]
    %v20 = vlaneseq
    %v21 = vshrl.u32 %v20, 7
    %v22 = vsub.s32 0, %v21
    %v23 = vrot.slane %v18, %v22
    %vm25 = vcmask 130048
    %26 = vst.msk [vmem:[#allocation2] sm:$0xff] %vm25, %v23
    %27 = vst.msk [vmem:[#allocation2 + $0x8] sm:$0xff] %vm25, %v23
    %28 = vst.msk [vmem:[#allocation2 + $0x10] sm:$0xff] %vm25, %v23
    %29 = vst.msk [vmem:[#allocation2 + $0x18] sm:$0xff] %vm25, %v23
    %30 = vst.msk [vmem:[#allocation2 + $0x20] sm:$0xff] %vm25, %v23
    %31 = vst.msk [vmem:[#allocation2 + $0x28] sm:$0xff] %vm25, %v23
    %32 = vst.msk [vmem:[#allocation2 + $0x30] sm:$0xff] %vm25, %v23
    %33 = vst.msk [vmem:[#allocation2 + $0x38] sm:$0xff] %vm25, %v23
    %34 = vst.msk [vmem:[#allocation2 + $0x40] sm:$0xff] %vm25, %v23
    %35 = vst.msk [vmem:[#allocation2 + $0x48] sm:$0xff] %vm25, %v23
    %36 = vst.msk [vmem:[#allocation2 + $0x50] sm:$0xff] %vm25, %v23
    %37 = vst.msk [vmem:[#allocation2 + $0x58] sm:$0xff] %vm25, %v23
    %38 = vst.msk [vmem:[#allocation2 + $0x60] sm:$0xff] %vm25, %v23
    %39 = vst.msk [vmem:[#allocation2 + $0x68] sm:$0xff] %vm25, %v23
    %40 = vst.msk [vmem:[#allocation2 + $0x70] sm:$0xff] %vm25, %v23
    %41 = vst.msk [vmem:[#allocation2 + $0x78] sm:$0xff] %vm25, %v23
  $region17: #{tpu_custom_call.1} parent=0 // pred_fallthru
    _
  %v42 = vld [vmem:[#allocation2] sm:$0xff]
  %v43 = vld [vmem:[#allocation2 + $0x8] sm:$0xff]
  %v44 = vld [vmem:[#allocation2 + $0x10] sm:$0xff]
  %v45 = vld [vmem:[#allocation2 + $0x18] sm:$0xff]
  %v46 = vld [vmem:[#allocation2 + $0x20] sm:$0xff]
  %v47 = vld [vmem:[#allocation2 + $0x28] sm:$0xff]
  %v48 = vld [vmem:[#allocation2 + $0x30] sm:$0xff]
  %v49 = vld [vmem:[#allocation2 + $0x38] sm:$0xff]
  %v50 = vld [vmem:[#allocation2 + $0x40] sm:$0xff]
  %v51 = vld [vmem:[#allocation2 + $0x48] sm:$0xff]
  %v52 = vld [vmem:[#allocation2 + $0x50] sm:$0xff]
  %v53 = vld [vmem:[#allocation2 + $0x58] sm:$0xff]
  %v54 = vld [vmem:[#allocation2 + $0x60] sm:$0xff]
  %v55 = vld [vmem:[#allocation2 + $0x68] sm:$0xff]
  %v56 = vld [vmem:[#allocation2 + $0x70] sm:$0xff]
  %v57 = vld [vmem:[#allocation2 + $0x78] sm:$0xff]
  %v58 = vld [vmem:[%s0] sm:$0xff]
  %v59 = vld [vmem:[%s0 + $0x8] sm:$0xff]
  %v60 = vld [vmem:[%s0 + $0x10] sm:$0xff]
  %v61 = vld [vmem:[%s0 + $0x18] sm:$0xff]
  %v62 = vld [vmem:[%s0 + $0x20] sm:$0xff]
  %v63 = vld [vmem:[%s0 + $0x28] sm:$0xff]
  %v64 = vld [vmem:[%s0 + $0x30] sm:$0xff]
  %v65 = vld [vmem:[%s0 + $0x38] sm:$0xff]
  %v66 = vld [vmem:[%s0 + $0x40] sm:$0xff]
  %v67 = vld [vmem:[%s0 + $0x48] sm:$0xff]
  %v68 = vld [vmem:[%s0 + $0x50] sm:$0xff]
  %v69 = vld [vmem:[%s0 + $0x58] sm:$0xff]
  %v70 = vld [vmem:[%s0 + $0x60] sm:$0xff]
  %v71 = vld [vmem:[%s0 + $0x68] sm:$0xff]
  %v72 = vld [vmem:[%s0 + $0x70] sm:$0xff]
  %v73 = vld [vmem:[%s0 + $0x78] sm:$0xff]
  %v74 = vld [vmem:[%s1] sm:$0xff]
  %v75 = vld [vmem:[%s1 + $0x8] sm:$0xff]
  %v76 = vld [vmem:[%s1 + $0x10] sm:$0xff]
  %v77 = vld [vmem:[%s1 + $0x18] sm:$0xff]
  %vm78 = vcmask 261120
  %v80 = vsel %vm78, %v58, 0
  %v83 = vsel %vm78, %v59, 0
  %v86 = vsel %vm78, %v60, 0
  %v89 = vsel %vm78, %v61, 0
  %v92 = vsel %vm78, %v62, 0
  %v95 = vsel %vm78, %v63, 0
  %v98 = vsel %vm78, %v64, 0
  %v101 = vsel %vm78, %v65, 0
  %v104 = vsel %vm78, %v66, 0
  %v107 = vsel %vm78, %v67, 0
  %v110 = vsel %vm78, %v68, 0
  %v113 = vsel %vm78, %v69, 0
  %v116 = vsel %vm78, %v70, 0
  %v119 = vsel %vm78, %v71, 0
  %v122 = vsel %vm78, %v72, 0
  %v125 = vsel %vm78, %v73, 0
  %127 = vmatprep.subr.mxu0 0.0
  %128 = vmatpush1.msra.mxu0 %v74
  %129 = vmatprep.subr.mxu0 0.0
  %130 = vmatpush1.msra.mxu0 %v75
  %131 = vmatprep.subr.mxu0 0.0
  %132 = vmatpush1.msra.mxu0 %v76
  %133 = vmatprep.subr.mxu0 0.0
  %134 = vmatpush1.msra.mxu0 %v77
  %135 = vmatprep.subr.mxu0 0.0
  %136 = vmatpush1.msra.mxu0 0.0
  %137 = vmatprep.subr.mxu0 0.0
  %138 = vmatpush1.msra.mxu0 0.0
  %139 = vmatprep.subr.mxu0 0.0
  %140 = vmatpush1.msra.mxu0 0.0
  %141 = vmatprep.subr.mxu0 0.0
  %142 = vmatpush1.msra.mxu0 0.0
  %143 = vmatprep.subr.mxu0 0.0
  %144 = vmatpush1.msra.mxu0 0.0
  %145 = vmatprep.subr.mxu0 0.0
  %146 = vmatpush1.msra.mxu0 0.0
  %147 = vmatprep.subr.mxu0 0.0
  %148 = vmatpush1.msra.mxu0 0.0
  %149 = vmatprep.subr.mxu0 0.0
  %150 = vmatpush1.msra.mxu0 0.0
  %151 = vmatprep.subr.mxu0 0.0
  %152 = vmatpush1.msra.mxu0 0.0
  %153 = vmatprep.subr.mxu0 0.0
  %154 = vmatpush1.msra.mxu0 0.0
  %155 = vmatprep.subr.mxu0 0.0
  %156 = vmatpush1.msra.mxu0 0.0
  %157 = vmatprep.subr.mxu0 0.0
  %158 = vmatpush1.msra.mxu0 0.0
  %159 = vmatprep.subr.mxu0 0.0
  %160 = vmatpush1.msra.mxu0 0.0
  %161 = vmatprep.subr.mxu0 0.0
  %162 = vmatpush1.msra.mxu0 0.0
  %163 = vmatprep.subr.mxu0 0.0
  %164 = vmatpush1.msra.mxu0 0.0
  %165 = vmatprep.subr.mxu0 0.0
  %166 = vmatpush1.msra.mxu0 0.0
  %167 = vmatprep.subr.mxu0 0.0
  %168 = vmatpush1.msra.mxu0 0.0
  %169 = vmatprep.subr.mxu0 0.0
  %170 = vmatpush1.msra.mxu0 0.0
  %171 = vmatprep.subr.mxu0 0.0
  %172 = vmatpush1.msra.mxu0 0.0
  %173 = vmatprep.subr.mxu0 0.0
  %174 = vmatpush1.msra.mxu0 0.0
  %175 = vmatprep.subr.mxu0 0.0
  %176 = vmatpush1.msra.mxu0 0.0
  %177 = vmatprep.subr.mxu0 0.0
  %178 = vmatpush1.msra.mxu0 0.0
  %179 = vmatprep.subr.mxu0 0.0
  %180 = vmatpush1.msra.mxu0 0.0
  %181 = vmatprep.subr.mxu0 0.0
  %182 = vmatpush1.msra.mxu0 0.0
  %183 = vmatprep.subr.mxu0 0.0
  %184 = vmatpush1.msra.mxu0 0.0
  %185 = vmatprep.subr.mxu0 0.0
  %186 = vmatpush1.msra.mxu0 0.0
  %187 = vmatprep.subr.mxu0 0.0
  %188 = vmatpush1.msra.mxu0 0.0
  %189 = vmatprep.subr.mxu0 0.0
  %190 = vmatpush1.msra.mxu0 0.0
  %191 = vmatprep.mubr.f32.mxu0 0.0
  %192 = vmatmul.mubr.f32.gmra.mrb[0].mxu0 %v80
  %v193 = vpop.f32.mrb[0].mxu0
  %v194 = vadd.f32 0.0, %v193
  %v195 = vpop.f32.mrb[0].mxu0
  %196 = vmatprep.mubr.f32.mxu0 0.0
  %197 = vmatmul.mubr.f32.gmra.mrb[0].mxu0 %v83
  %v198 = vpop.f32.mrb[0].mxu0
  %v199 = vadd.f32 0.0, %v198
  %v200 = vpop.f32.mrb[0].mxu0
  %201 = vmatprep.mubr.f32.mxu0 0.0
  %202 = vmatmul.mubr.f32.gmra.mrb[0].mxu0 %v86
  %v203 = vpop.f32.mrb[0].mxu0
  %v204 = vadd.f32 0.0, %v203
  %v205 = vpop.f32.mrb[0].mxu0
  %206 = vmatprep.mubr.f32.mxu0 0.0
  %207 = vmatmul.mubr.f32.gmra.mrb[0].mxu0 %v89
  %v208 = vpop.f32.mrb[0].mxu0
  %v209 = vadd.f32 0.0, %v208
  %v210 = vpop.f32.mrb[0].mxu0
  %211 = vmatprep.mubr.f32.mxu0 0.0
  %212 = vmatmul.mubr.f32.gmra.mrb[0].mxu0 %v92
  %v213 = vpop.f32.mrb[0].mxu0
  %v214 = vadd.f32 0.0, %v213
  %v215 = vpop.f32.mrb[0].mxu0
  %216 = vmatprep.mubr.f32.mxu0 0.0
  %217 = vmatmul.mubr.f32.gmra.mrb[0].mxu0 %v95
  %v218 = vpop.f32.mrb[0].mxu0
  %v219 = vadd.f32 0.0, %v218
  %v220 = vpop.f32.mrb[0].mxu0
  %221 = vmatprep.mubr.f32.mxu0 0.0
  %222 = vmatmul.mubr.f32.gmra.mrb[0].mxu0 %v98
  %v223 = vpop.f32.mrb[0].mxu0
  %v224 = vadd.f32 0.0, %v223
  %v225 = vpop.f32.mrb[0].mxu0
  %226 = vmatprep.mubr.f32.mxu0 0.0
  %227 = vmatmul.mubr.f32.gmra.mrb[0].mxu0 %v101
  %v228 = vpop.f32.mrb[0].mxu0
  %v229 = vadd.f32 0.0, %v228
  %v230 = vpop.f32.mrb[0].mxu0
  %231 = vmatprep.mubr.f32.mxu0 0.0
  %232 = vmatmul.mubr.f32.gmra.mrb[0].mxu0 %v104
  %v233 = vpop.f32.mrb[0].mxu0
  %v234 = vadd.f32 0.0, %v233
  %v235 = vpop.f32.mrb[0].mxu0
  %236 = vmatprep.mubr.f32.mxu0 0.0
  %237 = vmatmul.mubr.f32.gmra.mrb[0].mxu0 %v107
  %v238 = vpop.f32.mrb[0].mxu0
  %v239 = vadd.f32 0.0, %v238
  %v240 = vpop.f32.mrb[0].mxu0
  %241 = vmatprep.mubr.f32.mxu0 0.0
  %242 = vmatmul.mubr.f32.gmra.mrb[0].mxu0 %v110
  %v243 = vpop.f32.mrb[0].mxu0
  %v244 = vadd.f32 0.0, %v243
  %v245 = vpop.f32.mrb[0].mxu0
  %246 = vmatprep.mubr.f32.mxu0 0.0
  %247 = vmatmul.mubr.f32.gmra.mrb[0].mxu0 %v113
  %v248 = vpop.f32.mrb[0].mxu0
  %v249 = vadd.f32 0.0, %v248
  %v250 = vpop.f32.mrb[0].mxu0
  %251 = vmatprep.mubr.f32.mxu0 0.0
  %252 = vmatmul.mubr.f32.gmra.mrb[0].mxu0 %v116
  %v253 = vpop.f32.mrb[0].mxu0
  %v254 = vadd.f32 0.0, %v253
  %v255 = vpop.f32.mrb[0].mxu0
  %256 = vmatprep.mubr.f32.mxu0 0.0
  %257 = vmatmul.mubr.f32.gmra.mrb[0].mxu0 %v119
  %v258 = vpop.f32.mrb[0].mxu0
  %v259 = vadd.f32 0.0, %v258
  %v260 = vpop.f32.mrb[0].mxu0
  %261 = vmatprep.mubr.f32.mxu0 0.0
  %262 = vmatmul.mubr.f32.gmra.mrb[0].mxu0 %v122
  %v263 = vpop.f32.mrb[0].mxu0
  %v264 = vadd.f32 0.0, %v263
  %v265 = vpop.f32.mrb[0].mxu0
  %266 = vmatprep.mubr.f32.mxu0 0.0
  %267 = vmatmul.mubr.f32.gmra.mrb[0].mxu0 %v125
  %v268 = vpop.f32.mrb[0].mxu0
  %v269 = vadd.f32 0.0, %v268
  %v270 = vpop.f32.mrb[0].mxu0
  %271 = vdwg.mxu0
  %v272 = vadd.f32 %v42, %v194
  %v273 = vadd.f32 %v43, %v199
  %v274 = vadd.f32 %v44, %v204
  %v275 = vadd.f32 %v45, %v209
  %v276 = vadd.f32 %v46, %v214
  %v277 = vadd.f32 %v47, %v219
  %v278 = vadd.f32 %v48, %v224
  %v279 = vadd.f32 %v49, %v229
  %v280 = vadd.f32 %v50, %v234
  %v281 = vadd.f32 %v51, %v239
  %v282 = vadd.f32 %v52, %v244
  %v283 = vadd.f32 %v53, %v249
  %v284 = vadd.f32 %v54, %v254
  %v285 = vadd.f32 %v55, %v259
  %v286 = vadd.f32 %v56, %v264
  %v287 = vadd.f32 %v57, %v269
  %vm288 = vcmask 130048
  %289 = vst.msk [vmem:[#allocation2] sm:$0xff] %vm288, %v272
  %290 = vst.msk [vmem:[#allocation2 + $0x8] sm:$0xff] %vm288, %v273
  %291 = vst.msk [vmem:[#allocation2 + $0x10] sm:$0xff] %vm288, %v274
  %292 = vst.msk [vmem:[#allocation2 + $0x18] sm:$0xff] %vm288, %v275
  %293 = vst.msk [vmem:[#allocation2 + $0x20] sm:$0xff] %vm288, %v276
  %294 = vst.msk [vmem:[#allocation2 + $0x28] sm:$0xff] %vm288, %v277
  %295 = vst.msk [vmem:[#allocation2 + $0x30] sm:$0xff] %vm288, %v278
  %296 = vst.msk [vmem:[#allocation2 + $0x38] sm:$0xff] %vm288, %v279
  %297 = vst.msk [vmem:[#allocation2 + $0x40] sm:$0xff] %vm288, %v280
  %298 = vst.msk [vmem:[#allocation2 + $0x48] sm:$0xff] %vm288, %v281
  %299 = vst.msk [vmem:[#allocation2 + $0x50] sm:$0xff] %vm288, %v282
  %300 = vst.msk [vmem:[#allocation2 + $0x58] sm:$0xff] %vm288, %v283
  %301 = vst.msk [vmem:[#allocation2 + $0x60] sm:$0xff] %vm288, %v284
  %302 = vst.msk [vmem:[#allocation2 + $0x68] sm:$0xff] %vm288, %v285
  %303 = vst.msk [vmem:[#allocation2 + $0x70] sm:$0xff] %vm288, %v286
  %304 = vst.msk [vmem:[#allocation2 + $0x78] sm:$0xff] %vm288, %v287
  // Predicated region
  $region18: #{tpu_custom_call.1} parent=0 // pred_check
    %p305 = pneg %p14
  $region19: #{tpu_custom_call.1} parent=0 // pred_check_branch
    %307 = sbr.rel (%p305) target = $region21
  $region20: #{tpu_custom_call.1} parent=0 // pred_region
    %v308 = vld [vmem:[#allocation2] sm:$0xff]
    %v309 = vld [vmem:[#allocation2 + $0x8] sm:$0xff]
    %v310 = vld [vmem:[#allocation2 + $0x10] sm:$0xff]
    %v311 = vld [vmem:[#allocation2 + $0x18] sm:$0xff]
    %v312 = vld [vmem:[#allocation2 + $0x20] sm:$0xff]
    %v313 = vld [vmem:[#allocation2 + $0x28] sm:$0xff]
    %v314 = vld [vmem:[#allocation2 + $0x30] sm:$0xff]
    %v315 = vld [vmem:[#allocation2 + $0x38] sm:$0xff]
    %v316 = vld [vmem:[#allocation2 + $0x40] sm:$0xff]
    %v317 = vld [vmem:[#allocation2 + $0x48] sm:$0xff]
    %v318 = vld [vmem:[#allocation2 + $0x50] sm:$0xff]
    %v319 = vld [vmem:[#allocation2 + $0x58] sm:$0xff]
    %v320 = vld [vmem:[#allocation2 + $0x60] sm:$0xff]
    %v321 = vld [vmem:[#allocation2 + $0x68] sm:$0xff]
    %v322 = vld [vmem:[#allocation2 + $0x70] sm:$0xff]
    %v323 = vld [vmem:[#allocation2 + $0x78] sm:$0xff]
    %324 = vst.msk [vmem:[%s3] sm:$0xff] %vm288, %v308
    %325 = vst.msk [vmem:[%s3 + $0x8] sm:$0xff] %vm288, %v309
    %326 = vst.msk [vmem:[%s3 + $0x10] sm:$0xff] %vm288, %v310
    %327 = vst.msk [vmem:[%s3 + $0x18] sm:$0xff] %vm288, %v311
    %328 = vst.msk [vmem:[%s3 + $0x20] sm:$0xff] %vm288, %v312
    %329 = vst.msk [vmem:[%s3 + $0x28] sm:$0xff] %vm288, %v313
    %330 = vst.msk [vmem:[%s3 + $0x30] sm:$0xff] %vm288, %v314
    %331 = vst.msk [vmem:[%s3 + $0x38] sm:$0xff] %vm288, %v315
    %332 = vst.msk [vmem:[%s3 + $0x40] sm:$0xff] %vm288, %v316
    %333 = vst.msk [vmem:[%s3 + $0x48] sm:$0xff] %vm288, %v317
    %334 = vst.msk [vmem:[%s3 + $0x50] sm:$0xff] %vm288, %v318
    %335 = vst.msk [vmem:[%s3 + $0x58] sm:$0xff] %vm288, %v319
    %336 = vst.msk [vmem:[%s3 + $0x60] sm:$0xff] %vm288, %v320
    %337 = vst.msk [vmem:[%s3 + $0x68] sm:$0xff] %vm288, %v321
    %338 = vst.msk [vmem:[%s3 + $0x70] sm:$0xff] %vm288, %v322
    %339 = vst.msk [vmem:[%s3 + $0x78] sm:$0xff] %vm288, %v323
  $region21: #{tpu_custom_call.1} parent=0 // pred_fallthru
    _
  // Predicated region
  $region22: #{tpu_custom_call.1} parent=0 // pred_check
    _
  $region23: #{tpu_custom_call.1} parent=0 // pred_check_branch
    %341 = sbr.rel (0) target = $region25
  $region24: #{tpu_custom_call.1} parent=0 // pred_region
    _
  $region25: #{tpu_custom_call.1} parent=0 // pred_fallthru
    _
  // Predicated region
  $region26: #{tpu_custom_call.1} parent=0 // pred_check
    _
  $region27: #{tpu_custom_call.1} parent=0 // pred_check_branch
    %343 = sbr.rel (0) target = $region29
  $region28: #{tpu_custom_call.1} parent=0 // pred_region
    _
  $region29: #{tpu_custom_call.1} parent=0 // pred_fallthru
    _

</llo_original>
